<compile_context>
chip_gen: v5e
topology: v5e:2x2
jax: 0.10.0
libtpu: 0.0.40
codegen_flags: <defaults>
</compile_context>

<pallas_src>
import functools

import jax
import jax.numpy as jnp
from jax.experimental import pallas as pl
from jax.experimental.pallas import tpu as pltpu

BN_EPS = 1e-5     # PyTorch BatchNorm1d default eps (training mode -> batch stats)
NEG_BIG = -1e30   # pad-lane logit bias: exp(NEG_BIG - 0) == 0.0 exactly in f32


# ---------------------------------------------------------------------------
# Shared in-kernel helpers
# ---------------------------------------------------------------------------
def _linear(h, w_bf16, b_row):
    # MXU matmul: bf16 in, f32 accumulate. astype is a no-op if h is already bf16.
    return jnp.dot(h.astype(jnp.bfloat16), w_bf16,
                   preferred_element_type=jnp.float32) + b_row


def _bn_relu(z, mu, var, g, be):
    # BatchNorm1d training-mode normalization (biased var) + ReLU, f32 math.
    return jnp.maximum((z - mu) * jax.lax.rsqrt(var + BN_EPS) * g + be, 0.0)


def _heads_softmax(h, whead_bf16, bias_row, output_dims):
    """Fused multi-head logits + per-head (lane-segment) softmax.

    whead pad columns are zero and bias_row pad lanes are -1e30, so pad lanes
    need no masking: exp underflows to 0 and inv stays 0 there.
    """
    logits = _linear(h, whead_bf16, bias_row)                       # (N, HPAD)
    col = jax.lax.broadcasted_iota(jnp.int32, logits.shape, 1)      # built once

    m = jnp.zeros_like(logits)
    masks = []
    off = 0
    for d in output_dims:                                           # static loop
        mask = (col >= off) & (col < off + d)
        masks.append(mask)
        seg_max = jnp.max(jnp.where(mask, logits, NEG_BIG), axis=1, keepdims=True)
        m = jnp.where(mask, seg_max, m)
        off += d

    e = jnp.exp(logits - m)                                         # pad lanes -> 0

    inv = jnp.zeros_like(logits)
    for mask in masks:
        seg_sum = jnp.sum(jnp.where(mask, e, 0.0), axis=1, keepdims=True)
        inv = jnp.where(mask, 1.0 / seg_sum, inv)                   # exact divide
    return e * inv                                                  # pad lanes stay 0


# ---------------------------------------------------------------------------
# Kernels
# ---------------------------------------------------------------------------
def _fused_kernel(x_ref, wpack_ref, whead_ref, vecs_ref, out_ref, *, output_dims):
    """Gridless small-batch path: whole batch resident, in-kernel BN stats."""
    c = x_ref.shape[1]
    hpad = out_ref.shape[1]
    v = vecs_ref[...]

    z1 = _linear(x_ref[...], wpack_ref[0], v[0:1, :c])
    mu1 = jnp.mean(z1, axis=0, keepdims=True)
    var1 = jnp.mean(jnp.square(z1 - mu1), axis=0, keepdims=True)
    h1 = _bn_relu(z1, mu1, var1, v[1:2, :c], v[2:3, :c])

    z2 = _linear(h1, wpack_ref[1], v[3:4, :c])
    mu2 = jnp.mean(z2, axis=0, keepdims=True)
    var2 = jnp.mean(jnp.square(z2 - mu2), axis=0, keepdims=True)
    h2 = _bn_relu(z2, mu2, var2, v[4:5, :c], v[5:6, :c])

    out_ref[...] = _heads_softmax(h2, whead_ref[...], v[6:7, :hpad], output_dims)


def _stats1_kernel(x_ref, wpack_ref, vecs_ref, stats_ref):
    """Pass 1 (batch grid, 'arbitrary'): accumulate sum / sumsq of z1 = x@W1+b1."""
    c = x_ref.shape[1]

    @pl.when(pl.program_id(0) == 0)
    def _():
        stats_ref[...] = jnp.zeros_like(stats_ref)

    z1 = _linear(x_ref[...], wpack_ref[0], vecs_ref[0:1, :c])
    stats_ref[0:1, :] += jnp.sum(z1, axis=0, keepdims=True)
    stats_ref[1:2, :] += jnp.sum(z1 * z1, axis=0, keepdims=True)


def _stats2_kernel(x_ref, wpack_ref, vecs_ref, s1_ref, stats_ref):
    """Pass 2 (batch grid, 'arbitrary'): accumulate sum / sumsq of z2 = h1@W2+b2."""
    c = x_ref.shape[1]

    @pl.when(pl.program_id(0) == 0)
    def _():
        stats_ref[...] = jnp.zeros_like(stats_ref)

    v = vecs_ref[...]
    z1 = _linear(x_ref[...], wpack_ref[0], v[0:1, :c])
    h1 = _bn_relu(z1, s1_ref[0:1, :], s1_ref[1:2, :], v[1:2, :c], v[2:3, :c])
    z2 = _linear(h1, wpack_ref[1], v[3:4, :c])
    stats_ref[0:1, :] += jnp.sum(z2, axis=0, keepdims=True)
    stats_ref[1:2, :] += jnp.sum(z2 * z2, axis=0, keepdims=True)


def _final_kernel(x_ref, wpack_ref, whead_ref, vecs_ref, stats_ref, out_ref, *,
                  output_dims):
    """Pass 3 (batch grid, 'parallel'): full forward per tile with global BN stats."""
    c = x_ref.shape[1]
    hpad = out_ref.shape[1]
    v = vecs_ref[...]
    st = stats_ref[...]                      # rows: mu1, var1, mu2, var2

    z1 = _linear(x_ref[...], wpack_ref[0], v[0:1, :c])
    h1 = _bn_relu(z1, st[0:1, :], st[1:2, :], v[1:2, :c], v[2:3, :c])
    z2 = _linear(h1, wpack_ref[1], v[3:4, :c])
    h2 = _bn_relu(z2, st[2:3, :], st[3:4, :], v[4:5, :c], v[5:6, :c])
    out_ref[...] = _heads_softmax(h2, whead_ref[...], v[6:7, :hpad], output_dims)


# ---------------------------------------------------------------------------
# Wrappers
# ---------------------------------------------------------------------------
def _cost(n, c, hpad):
    return pl.CostEstimate(
        flops=int(n * (4 * c * c + 2 * c * hpad)),
        transcendentals=int(n * hpad),
        bytes_accessed=int(4 * n * (c + hpad) + 2 * (2 * c * c + c * hpad)
                           + 4 * 7 * max(c, hpad)),
    )


def _gridless_forward(x, packed, output_dims):
    n, c = x.shape
    hpad = packed["whead"].shape[1]
    vmem = pl.BlockSpec(memory_space=pltpu.MemorySpace.VMEM)
    return pl.pallas_call(
        functools.partial(_fused_kernel, output_dims=output_dims),
        out_shape=jax.ShapeDtypeStruct((n, hpad), jnp.float32),
        in_specs=[vmem, vmem, vmem, vmem],
        out_specs=vmem,
        compiler_params=pltpu.CompilerParams(vmem_limit_bytes=32 * 1024 * 1024),
        cost_estimate=_cost(n, c, hpad),
    )(x, packed["wpack"], packed["whead"], packed["vecs"])


def _tiled_forward(x, packed, output_dims, tile_n):
    n, c = x.shape
    hpad = packed["whead"].shape[1]
    num_tiles = n // tile_n
    wpack, whead, vecs = packed["wpack"], packed["whead"], packed["vecs"]

    # x / out tiles move per grid step; weights & vecs use constant block indices
    # so they are DMA'd once and stay VMEM-resident across the grid.
    xspec = pl.BlockSpec((tile_n, c), lambda i: (i, 0))
    wspec = pl.BlockSpec(wpack.shape, lambda i: (0, 0, 0))
    hspec = pl.BlockSpec(whead.shape, lambda i: (0, 0))
    vspec = pl.BlockSpec(vecs.shape, lambda i: (0, 0))
    sspec2 = pl.BlockSpec((2, c), lambda i: (0, 0))
    sspec4 = pl.BlockSpec((4, c), lambda i: (0, 0))
    arb = pltpu.CompilerParams(dimension_semantics=("arbitrary",))

    # Pass 1: BN1 batch stats (sum, sumsq) accumulated across batch tiles.
    sums1 = pl.pallas_call(
        _stats1_kernel,
        grid=(num_tiles,),
        in_specs=[xspec, wspec, vspec],
        out_specs=sspec2,
        out_shape=jax.ShapeDtypeStruct((2, c), jnp.float32),
        compiler_params=arb,
    )(x, wpack, vecs)
    mu1 = sums1[0:1] / n
    var1 = sums1[1:2] / n - mu1 * mu1
    s1 = jnp.concatenate([mu1, var1], axis=0)

    # Pass 2: BN2 batch stats (needs global BN1 stats).
    sums2 = pl.pallas_call(
        _stats2_kernel,
        grid=(num_tiles,),
        in_specs=[xspec, wspec, vspec, sspec2],
        out_specs=sspec2,
        out_shape=jax.ShapeDtypeStruct((2, c), jnp.float32),
        compiler_params=arb,
    )(x, wpack, vecs, s1)
    mu2 = sums2[0:1] / n
    var2 = sums2[1:2] / n - mu2 * mu2
    stats = jnp.concatenate([mu1, var1, mu2, var2], axis=0)     # (4, c)

    # Pass 3: per-tile normalize + ReLU + fused heads + softmax ('parallel' axis
    # so v7x's two TensorCores split the batch tiles).
    return pl.pallas_call(
        functools.partial(_final_kernel, output_dims=output_dims),
        grid=(num_tiles,),
        in_specs=[xspec, wspec, hspec, vspec, sspec4],
        out_specs=pl.BlockSpec((tile_n, hpad), lambda i: (i, 0)),
        out_shape=jax.ShapeDtypeStruct((n, hpad), jnp.float32),
        compiler_params=pltpu.CompilerParams(
            dimension_semantics=("parallel",),
            vmem_limit_bytes=32 * 1024 * 1024),
        cost_estimate=_cost(n, c, hpad),
    )(x, wpack, whead, vecs, stats)


@functools.partial(jax.jit, static_argnames=("output_dims", "tile_n"))
def model_forward(x, packed, output_dims, tile_n=256):
    n = x.shape[0]
    d_total = sum(output_dims)
    hpad = packed["whead"].shape[1]
    assert hpad % 128 == 0 and hpad >= d_total

    if tile_n is None or n <= tile_n or n % tile_n != 0:
        slab = _gridless_forward(x, packed, output_dims)
    else:
        slab = _tiled_forward(x, packed, output_dims, tile_n)

    # Slice the lane-dense slab back into per-head softmax outputs (lazy views).
    outs = []
    off = 0
    for d in output_dims:
        outs.append(slab[:, off:off + d])
        off += d
    return outs


# ---------------------------------------------------------------------------
# Parameter init / packing (mirrors _initialize_weights)
# ---------------------------------------------------------------------------
def init_params(key, in_channel, output_dims):
    """Linear.weight ~ N(0, 0.02) (stored transposed [in,out]), bias = 0,
       BN gamma = 1, beta = 0."""
    c = in_channel
    ks = jax.random.split(key, 2 + len(output_dims))

    def lin(k, din, dout):
        w = 0.02 * jax.random.normal(k, (din, dout), jnp.float32)
        b = jnp.zeros((dout,), jnp.float32)
        return w, b

    w1, b1 = lin(ks[0], c, c)
    w2, b2 = lin(ks[1], c, c)
    raw = dict(
        w1=w1, b1=b1, g1=jnp.ones((c,), jnp.float32), be1=jnp.zeros((c,), jnp.float32),
        w2=w2, b2=b2, g2=jnp.ones((c,), jnp.float32), be2=jnp.zeros((c,), jnp.float32),
    )
    for i, d in enumerate(output_dims):
        w, b = lin(ks[2 + i], c, d)
        raw[f"wh{i}"] = w
        raw[f"bh{i}"] = b
    return raw


def pack_params(raw, output_dims):
    """Pack raw params into the few wide arrays the kernels consume."""
    c = raw["w1"].shape[0]
    d_total = sum(output_dims)
    hpad = max(128, -(-d_total // 128) * 128)
    vw = max(c, hpad)

    wpack = jnp.stack([raw["w1"], raw["w2"]]).astype(jnp.bfloat16)       # (2, C, C)

    whead = jnp.zeros((c, hpad), jnp.float32)
    bhead = jnp.full((hpad,), NEG_BIG, jnp.float32)   # pad lanes -> logits ~= -1e30
    off = 0
    for i, d in enumerate(output_dims):
        whead = whead.at[:, off:off + d].set(raw[f"wh{i}"])
        bhead = bhead.at[off:off + d].set(raw[f"bh{i}"])
        off += d
    whead = whead.astype(jnp.bfloat16)                                   # (C, HPAD)

    def pad_row(vec):
        vec = vec.reshape(-1)
        return jnp.pad(vec, (0, vw - vec.shape[0]))

    vecs = jnp.stack([pad_row(raw[k])
                      for k in ("b1", "g1", "be1", "b2", "g2", "be2")]
                     + [pad_row(bhead)])                                 # (7, VW) f32
    return dict(wpack=wpack, whead=whead, vecs=vecs)


def reference_forward(x, raw, output_dims):
    """Pure-JAX reference with identical bf16 matmul casting, for the check."""
    def lin_bn_relu(h, w, b, g, be):
        h = jnp.dot(h.astype(jnp.bfloat16), w.astype(jnp.bfloat16),
                    preferred_element_type=jnp.float32) + b
        mu = jnp.mean(h, axis=0, keepdims=True)
        var = jnp.mean(jnp.square(h - mu), axis=0, keepdims=True)
        h = (h - mu) / jnp.sqrt(var + BN_EPS) * g + be
        return jnp.maximum(h, 0.0)

    h = lin_bn_relu(x, raw["w1"], raw["b1"], raw["g1"], raw["be1"])
    h = lin_bn_relu(h, raw["w2"], raw["b2"], raw["g2"], raw["be2"])
    outs = []
    for i, _ in enumerate(output_dims):
        logits = jnp.dot(h.astype(jnp.bfloat16), raw[f"wh{i}"].astype(jnp.bfloat16),
                         preferred_element_type=jnp.float32) + raw[f"bh{i}"]
        outs.append(jax.nn.softmax(logits, axis=1))
    return outs


if __name__ == "__main__":
    in_channel = 128
    output_dims = (64, 32)

    key = jax.random.PRNGKey(0)
    kx, kp, kb = jax.random.split(key, 3)
    raw = init_params(kp, in_channel, output_dims)
    packed = pack_params(raw, output_dims)

    # --- small batch: gridless VMEM-resident path (call-overhead dominated) ---
    batch = 8
    x = jax.random.normal(kx, (batch, in_channel), jnp.float32)
    outs = jax.block_until_ready(model_forward(x, packed, output_dims))
    refs = reference_forward(x, raw, output_dims)
    for o, r, d in zip(outs, refs, output_dims):
        assert o.shape == (batch, d) and o.dtype == jnp.float32
        assert jnp.allclose(o, r, atol=1e-3, rtol=1e-3), "mismatch vs JAX reference"
        assert jnp.allclose(jnp.sum(o, axis=1), 1.0, atol=1e-3)

    # --- larger batch: batch-grid path (two-pass BN stats, resident weights) ---
    batch_l = 1024
    xl = jax.random.normal(kb, (batch_l, in_channel), jnp.float32)
    outs_l = jax.block_until_ready(model_forward(xl, packed, output_dims, tile_n=256))
    refs_l = reference_forward(xl, raw, output_dims)
    for o, r, d in zip(outs_l, refs_l, output_dims):
        assert o.shape == (batch_l, d) and o.dtype == jnp.float32
        assert jnp.allclose(o, r, atol=1e-3, rtol=1e-3), "mismatch vs JAX reference"
        assert jnp.allclose(jnp.sum(o, axis=1), 1.0, atol=1e-3)

    print("KERNEL_OK")
</pallas_src>

<mosaic_0001>
module attributes {stable_mosaic.version = 11 : i64} {
  func.func @_fused_kernel(%arg0: memref<8x128xf32, #tpu.memory_space<vmem>>, %arg1: memref<2x128x128xbf16, #tpu.memory_space<vmem>>, %arg2: memref<128x128xbf16, #tpu.memory_space<vmem>>, %arg3: memref<7x128xf32, #tpu.memory_space<vmem>>, %arg4: memref<8x128xf32, #tpu.memory_space<vmem>>) attributes {dimension_semantics = [], scalar_prefetch = 0 : i64, scratch_operands = 0 : i64, tpu.core_type = #tpu.core_type<tc>} {
    %c0 = arith.constant 0 : index
    %c0_0 = arith.constant 0 : index
    %0 = vector.load %arg3[%c0, %c0_0] : memref<7x128xf32, #tpu.memory_space<vmem>>, vector<7x128xf32>
    %c0_1 = arith.constant 0 : index
    %c0_2 = arith.constant 0 : index
    %1 = vector.load %arg0[%c0_1, %c0_2] : memref<8x128xf32, #tpu.memory_space<vmem>>, vector<8x128xf32>
    %c0_3 = arith.constant 0 : index
    %c0_4 = arith.constant 0 : index
    %c0_5 = arith.constant 0 : index
    %2 = vector.load %arg1[%c0_3, %c0_4, %c0_5] : memref<2x128x128xbf16, #tpu.memory_space<vmem>>, vector<1x128x128xbf16>
    %3 = vector.shape_cast %2 : vector<1x128x128xbf16> to vector<128x128xbf16>
    %4 = vector.extract_strided_slice %0 {offsets = [0, 0], sizes = [1, 128], strides = [1, 1]} : vector<7x128xf32> to vector<1x128xf32>
    %5 = arith.truncf %1 : vector<8x128xf32> to vector<8x128xbf16>
    %cst = arith.constant dense<0.000000e+00> : vector<8x128xf32>
    %6 = tpu.matmul %5, %3, %cst {dimension_numbers = #tpu.dot_dimension_numbers<[1], [0], [0], [1], [0, 0, 1, 1], [], []>} : vector<8x128xbf16>, vector<128x128xbf16>, vector<8x128xf32> -> vector<8x128xf32>
    %7 = vector.broadcast %4 : vector<1x128xf32> to vector<8x128xf32>
    %8 = arith.addf %6, %7 : vector<8x128xf32>
    %cst_6 = arith.constant dense<0.000000e+00> : vector<128xf32>
    %9 = vector.multi_reduction <add>, %8, %cst_6 [0] : vector<8x128xf32> to vector<128xf32>
    %10 = vector.shape_cast %9 : vector<128xf32> to vector<1x128xf32>
    %cst_7 = arith.constant 8.000000e+00 : f32
    %11 = vector.broadcast %cst_7 : f32 to vector<1x128xf32>
    %12 = arith.divf %10, %11 : vector<1x128xf32>
    %13 = vector.broadcast %12 : vector<1x128xf32> to vector<8x128xf32>
    %14 = arith.subf %8, %13 : vector<8x128xf32>
    %15 = arith.mulf %14, %14 : vector<8x128xf32>
    %cst_8 = arith.constant dense<0.000000e+00> : vector<128xf32>
    %16 = vector.multi_reduction <add>, %15, %cst_8 [0] : vector<8x128xf32> to vector<128xf32>
    %17 = vector.shape_cast %16 : vector<128xf32> to vector<1x128xf32>
    %cst_9 = arith.constant 8.000000e+00 : f32
    %18 = vector.broadcast %cst_9 : f32 to vector<1x128xf32>
    %19 = arith.divf %17, %18 : vector<1x128xf32>
    %20 = vector.extract_strided_slice %0 {offsets = [1, 0], sizes = [1, 128], strides = [1, 1]} : vector<7x128xf32> to vector<1x128xf32>
    %21 = vector.extract_strided_slice %0 {offsets = [2, 0], sizes = [1, 128], strides = [1, 1]} : vector<7x128xf32> to vector<1x128xf32>
    %22 = vector.broadcast %12 : vector<1x128xf32> to vector<8x128xf32>
    %23 = arith.subf %8, %22 : vector<8x128xf32>
    %cst_10 = arith.constant 9.99999974E-6 : f32
    %24 = vector.broadcast %cst_10 : f32 to vector<1x128xf32>
    %25 = arith.addf %19, %24 : vector<1x128xf32>
    %26 = math.rsqrt %25 : vector<1x128xf32>
    %27 = vector.broadcast %26 : vector<1x128xf32> to vector<8x128xf32>
    %28 = arith.mulf %23, %27 : vector<8x128xf32>
    %29 = vector.broadcast %20 : vector<1x128xf32> to vector<8x128xf32>
    %30 = arith.mulf %28, %29 : vector<8x128xf32>
    %31 = vector.broadcast %21 : vector<1x128xf32> to vector<8x128xf32>
    %32 = arith.addf %30, %31 : vector<8x128xf32>
    %cst_11 = arith.constant 0.000000e+00 : f32
    %33 = vector.broadcast %cst_11 : f32 to vector<8x128xf32>
    %34 = arith.maximumf %32, %33 : vector<8x128xf32>
    %c1 = arith.constant 1 : index
    %c0_12 = arith.constant 0 : index
    %c0_13 = arith.constant 0 : index
    %35 = vector.load %arg1[%c1, %c0_12, %c0_13] : memref<2x128x128xbf16, #tpu.memory_space<vmem>>, vector<1x128x128xbf16>
    %36 = vector.shape_cast %35 : vector<1x128x128xbf16> to vector<128x128xbf16>
    %37 = vector.extract_strided_slice %0 {offsets = [3, 0], sizes = [1, 128], strides = [1, 1]} : vector<7x128xf32> to vector<1x128xf32>
    %38 = arith.truncf %34 : vector<8x128xf32> to vector<8x128xbf16>
    %cst_14 = arith.constant dense<0.000000e+00> : vector<8x128xf32>
    %39 = tpu.matmul %38, %36, %cst_14 {dimension_numbers = #tpu.dot_dimension_numbers<[1], [0], [0], [1], [0, 0, 1, 1], [], []>} : vector<8x128xbf16>, vector<128x128xbf16>, vector<8x128xf32> -> vector<8x128xf32>
    %40 = vector.broadcast %37 : vector<1x128xf32> to vector<8x128xf32>
    %41 = arith.addf %39, %40 : vector<8x128xf32>
    %cst_15 = arith.constant dense<0.000000e+00> : vector<128xf32>
    %42 = vector.multi_reduction <add>, %41, %cst_15 [0] : vector<8x128xf32> to vector<128xf32>
    %43 = vector.shape_cast %42 : vector<128xf32> to vector<1x128xf32>
    %cst_16 = arith.constant 8.000000e+00 : f32
    %44 = vector.broadcast %cst_16 : f32 to vector<1x128xf32>
    %45 = arith.divf %43, %44 : vector<1x128xf32>
    %46 = vector.broadcast %45 : vector<1x128xf32> to vector<8x128xf32>
    %47 = arith.subf %41, %46 : vector<8x128xf32>
    %48 = arith.mulf %47, %47 : vector<8x128xf32>
    %cst_17 = arith.constant dense<0.000000e+00> : vector<128xf32>
    %49 = vector.multi_reduction <add>, %48, %cst_17 [0] : vector<8x128xf32> to vector<128xf32>
    %50 = vector.shape_cast %49 : vector<128xf32> to vector<1x128xf32>
    %cst_18 = arith.constant 8.000000e+00 : f32
    %51 = vector.broadcast %cst_18 : f32 to vector<1x128xf32>
    %52 = arith.divf %50, %51 : vector<1x128xf32>
    %53 = vector.extract_strided_slice %0 {offsets = [4, 0], sizes = [1, 128], strides = [1, 1]} : vector<7x128xf32> to vector<1x128xf32>
    %54 = vector.extract_strided_slice %0 {offsets = [5, 0], sizes = [1, 128], strides = [1, 1]} : vector<7x128xf32> to vector<1x128xf32>
    %55 = vector.broadcast %45 : vector<1x128xf32> to vector<8x128xf32>
    %56 = arith.subf %41, %55 : vector<8x128xf32>
    %cst_19 = arith.constant 9.99999974E-6 : f32
    %57 = vector.broadcast %cst_19 : f32 to vector<1x128xf32>
    %58 = arith.addf %52, %57 : vector<1x128xf32>
    %59 = math.rsqrt %58 : vector<1x128xf32>
    %60 = vector.broadcast %59 : vector<1x128xf32> to vector<8x128xf32>
    %61 = arith.mulf %56, %60 : vector<8x128xf32>
    %62 = vector.broadcast %53 : vector<1x128xf32> to vector<8x128xf32>
    %63 = arith.mulf %61, %62 : vector<8x128xf32>
    %64 = vector.broadcast %54 : vector<1x128xf32> to vector<8x128xf32>
    %65 = arith.addf %63, %64 : vector<8x128xf32>
    %cst_20 = arith.constant 0.000000e+00 : f32
    %66 = vector.broadcast %cst_20 : f32 to vector<8x128xf32>
    %67 = arith.maximumf %65, %66 : vector<8x128xf32>
    %c0_21 = arith.constant 0 : index
    %c0_22 = arith.constant 0 : index
    %68 = vector.load %arg2[%c0_21, %c0_22] : memref<128x128xbf16, #tpu.memory_space<vmem>>, vector<128x128xbf16>
    %69 = vector.extract_strided_slice %0 {offsets = [6, 0], sizes = [1, 128], strides = [1, 1]} : vector<7x128xf32> to vector<1x128xf32>
    %70 = arith.truncf %67 : vector<8x128xf32> to vector<8x128xbf16>
    %cst_23 = arith.constant dense<0.000000e+00> : vector<8x128xf32>
    %71 = tpu.matmul %70, %68, %cst_23 {dimension_numbers = #tpu.dot_dimension_numbers<[1], [0], [0], [1], [0, 0, 1, 1], [], []>} : vector<8x128xbf16>, vector<128x128xbf16>, vector<8x128xf32> -> vector<8x128xf32>
    %72 = vector.broadcast %69 : vector<1x128xf32> to vector<8x128xf32>
    %73 = arith.addf %71, %72 : vector<8x128xf32>
    %74 = tpu.iota {dimensions = array<i32: 1>} : vector<8x128xi32>
    %cst_24 = arith.constant 0.000000e+00 : f32
    %75 = vector.broadcast %cst_24 : f32 to vector<8x128xf32>
    %c0_i32 = arith.constant 0 : i32
    %76 = vector.broadcast %c0_i32 : i32 to vector<8x128xi32>
    %77 = arith.cmpi sge, %74, %76 : vector<8x128xi32>
    %c64_i32 = arith.constant 64 : i32
    %78 = vector.broadcast %c64_i32 : i32 to vector<8x128xi32>
    %79 = arith.cmpi slt, %74, %78 : vector<8x128xi32>
    %80 = arith.andi %77, %79 : vector<8x128xi1>
    %cst_25 = arith.constant -1.000000e+30 : f32
    %81 = vector.broadcast %cst_25 : f32 to vector<8x128xf32>
    %82 = arith.select %80, %73, %81 : vector<8x128xi1>, vector<8x128xf32>
    %cst_26 = arith.constant dense<0xFF800000> : vector<8xf32>
    %83 = vector.multi_reduction <maximumf>, %82, %cst_26 [1] : vector<8x128xf32> to vector<8xf32>
    %84 = vector.shape_cast %83 : vector<8xf32> to vector<8x1xf32>
    %85 = vector.shape_cast %84 : vector<8x1xf32> to vector<8x1xf32>
    %86 = vector.broadcast %85 : vector<8x1xf32> to vector<8x128xf32>
    %87 = arith.select %80, %86, %75 : vector<8x128xi1>, vector<8x128xf32>
    %c64_i32_27 = arith.constant 64 : i32
    %88 = vector.broadcast %c64_i32_27 : i32 to vector<8x128xi32>
    %89 = arith.cmpi sge, %74, %88 : vector<8x128xi32>
    %c96_i32 = arith.constant 96 : i32
    %90 = vector.broadcast %c96_i32 : i32 to vector<8x128xi32>
    %91 = arith.cmpi slt, %74, %90 : vector<8x128xi32>
    %92 = arith.andi %89, %91 : vector<8x128xi1>
    %cst_28 = arith.constant -1.000000e+30 : f32
    %93 = vector.broadcast %cst_28 : f32 to vector<8x128xf32>
    %94 = arith.select %92, %73, %93 : vector<8x128xi1>, vector<8x128xf32>
    %cst_29 = arith.constant dense<0xFF800000> : vector<8xf32>
    %95 = vector.multi_reduction <maximumf>, %94, %cst_29 [1] : vector<8x128xf32> to vector<8xf32>
    %96 = vector.shape_cast %95 : vector<8xf32> to vector<8x1xf32>
    %97 = vector.shape_cast %96 : vector<8x1xf32> to vector<8x1xf32>
    %98 = vector.broadcast %97 : vector<8x1xf32> to vector<8x128xf32>
    %99 = arith.select %92, %98, %87 : vector<8x128xi1>, vector<8x128xf32>
    %100 = arith.subf %73, %99 : vector<8x128xf32>
    %101 = math.exp %100 : vector<8x128xf32>
    %cst_30 = arith.constant 0.000000e+00 : f32
    %102 = vector.broadcast %cst_30 : f32 to vector<8x128xf32>
    %cst_31 = arith.constant 0.000000e+00 : f32
    %103 = vector.broadcast %cst_31 : f32 to vector<8x128xf32>
    %104 = arith.select %80, %101, %103 : vector<8x128xi1>, vector<8x128xf32>
    %cst_32 = arith.constant dense<0.000000e+00> : vector<8xf32>
    %105 = vector.multi_reduction <add>, %104, %cst_32 [1] : vector<8x128xf32> to vector<8xf32>
    %106 = vector.shape_cast %105 : vector<8xf32> to vector<8x1xf32>
    %cst_33 = arith.constant 1.000000e+00 : f32
    %107 = vector.broadcast %cst_33 : f32 to vector<8x1xf32>
    %108 = arith.divf %107, %106 : vector<8x1xf32>
    %109 = vector.shape_cast %108 : vector<8x1xf32> to vector<8x1xf32>
    %110 = vector.broadcast %109 : vector<8x1xf32> to vector<8x128xf32>
    %111 = arith.select %80, %110, %102 : vector<8x128xi1>, vector<8x128xf32>
    %cst_34 = arith.constant 0.000000e+00 : f32
    %112 = vector.broadcast %cst_34 : f32 to vector<8x128xf32>
    %113 = arith.select %92, %101, %112 : vector<8x128xi1>, vector<8x128xf32>
    %cst_35 = arith.constant dense<0.000000e+00> : vector<8xf32>
    %114 = vector.multi_reduction <add>, %113, %cst_35 [1] : vector<8x128xf32> to vector<8xf32>
    %115 = vector.shape_cast %114 : vector<8xf32> to vector<8x1xf32>
    %cst_36 = arith.constant 1.000000e+00 : f32
    %116 = vector.broadcast %cst_36 : f32 to vector<8x1xf32>
    %117 = arith.divf %116, %115 : vector<8x1xf32>
    %118 = vector.shape_cast %117 : vector<8x1xf32> to vector<8x1xf32>
    %119 = vector.broadcast %118 : vector<8x1xf32> to vector<8x128xf32>
    %120 = arith.select %92, %119, %111 : vector<8x128xi1>, vector<8x128xf32>
    %121 = arith.mulf %101, %120 : vector<8x128xf32>
    %c0_37 = arith.constant 0 : index
    %c0_38 = arith.constant 0 : index
    %122 = vector.load %arg4[%c0_37, %c0_38] : memref<8x128xf32, #tpu.memory_space<vmem>>, vector<8x128xf32>
    tpu.vector_store %arg4[%c0_37, %c0_38], %121 {strides = array<i32>} : memref<8x128xf32, #tpu.memory_space<vmem>>, vector<8x128xf32>,
    return
  }
}

</mosaic_0001>

<llo_original>
// kernel: model_forward.1
$region0: #{model_forward.1}
  #allocation0 [shape = 'u32[]', space=smem, size = 0x4, offset = 0x4, fixed_abs, tag = 'smem constant byte address 0x4 - core index']
  #allocation1 [shape = 'u32[72,128]{1,0:T(1,128)}', space=vmem, size = 0x9000, scoped, tag = 'internal scratch']
  %s0 = inlined_call_operand.hbm [shape: f32[8,128], index: 0, kind: input, shape index: {}]
  %s1 = inlined_call_operand.hbm [shape: bf16[2,128,128], index: 1, kind: input, shape index: {}]
  %s2 = inlined_call_operand.hbm [shape: bf16[128,128], index: 2, kind: input, shape index: {}]
  %s3 = inlined_call_operand.hbm [shape: f32[7,128], index: 3, kind: input, shape index: {}]
  %s4 = inlined_call_operand.vmem [shape: f32[8,128], index: 4, kind: output, shape index: {}]
  %s5 = sld [smem:[#allocation0]]
  $region42: #{model_forward.1} parent=0
    _
  %s7 = ssub.s32 1, %s5
  %s8 = scalar_select 0, %s7, %s5
  $region1: #{model_forward.1} parent=0
    #allocation2 [shape = 'u8[4096]{0}', space=vmem, size = 0x1000, scoped, tag = 'input window, operand 0, single buffered']
    #allocation3 [shape = 's32[1]{0}', space=sflag, size = 0x4, scoped, tag = 'scoped memory for model_forward.1']
    #allocation4 [shape = 'u8[65536]{0}', space=vmem, size = 0x10000, scoped, tag = 'input window, operand 1, single buffered']
    #allocation5 [shape = 's32[1]{0}', space=sflag, size = 0x4, scoped, tag = 'scoped memory for model_forward.1']
    #allocation6 [shape = 'u8[32768]{0}', space=vmem, size = 0x8000, scoped, tag = 'input window, operand 2, single buffered']
    #allocation7 [shape = 'u8[4096]{0}', space=vmem, size = 0x1000, scoped, tag = 'input window, operand 3, single buffered']
    #allocation8 [shape = 's32[1]{0}', space=sflag, size = 0x4, scoped, tag = 'scoped memory for model_forward.1']
    %9 = vsyncpa [#allocation3], 0
    %10 = vsyncpa [#allocation5], 0
    %11 = vsyncpa [#allocation8], 0
    // Predicated region
    $region2: #{model_forward.1} parent=1 // pred_check
      _
    $region3: #{model_forward.1} parent=1 // pred_check_branch
      %13 = sbr.rel (0) target = $region5
    $region4: #{model_forward.1} parent=1 // pred_region
      %15 = vsyncadd [#allocation3], 0
      %s17 = sshll.u32 %s0, 4
      %s18 = int_to_ptr.hbm [resolvable:$true] %s17
      %s19 = sshll.u32 [#allocation2], 4
      %s20 = int_to_ptr.vmem [resolvable:$true] %s19
      %22 = dma.hbm_to_vmem [thread:$0]  %s18, 128, %s20, [#allocation3]
    $region5: #{model_forward.1} parent=1 // pred_fallthru
      _
    // Predicated region
    $region6: #{model_forward.1} parent=1 // pred_check
      _
    $region7: #{model_forward.1} parent=1 // pred_check_branch
      %24 = sbr.rel (0) target = $region9
    $region8: #{model_forward.1} parent=1 // pred_region
      %26 = vsyncadd [#allocation5], 0
      %s27 = sshll.u32 %s1, 4
      %s28 = int_to_ptr.hbm [resolvable:$true] %s27
      %s29 = sshll.u32 [#allocation4], 4
      %s30 = int_to_ptr.vmem [resolvable:$true] %s29
      %35 = dma.hbm_to_vmem [thread:$0]  %s28, 2048, %s30, [#allocation5], 64, 64, 4
    $region9: #{model_forward.1} parent=1 // pred_fallthru
      _
    // Predicated region
    $region10: #{model_forward.1} parent=1 // pred_check
      _
    $region11: #{model_forward.1} parent=1 // pred_check_branch
      %37 = sbr.rel (0) target = $region13
    $region12: #{model_forward.1} parent=1 // pred_region
      %39 = vsyncadd [#allocation5], 0
      %s40 = sshll.u32 %s2, 4
      %s41 = int_to_ptr.hbm [resolvable:$true] %s40
      %s42 = sshll.u32 [#allocation6], 4
      %s43 = int_to_ptr.vmem [resolvable:$true] %s42
      %48 = dma.hbm_to_vmem [thread:$0]  %s41, 1024, %s43, [#allocation5], 64, 64, 4
    $region13: #{model_forward.1} parent=1 // pred_fallthru
      _
    // Predicated region
    $region14: #{model_forward.1} parent=1 // pred_check
      _
    $region15: #{model_forward.1} parent=1 // pred_check_branch
      %50 = sbr.rel (0) target = $region17
    $region16: #{model_forward.1} parent=1 // pred_region
      %52 = vsyncadd [#allocation8], 0
      %s54 = sshll.u32 %s3, 4
      %s55 = int_to_ptr.hbm [resolvable:$true] %s54
      %s56 = sshll.u32 [#allocation7], 4
      %s57 = int_to_ptr.vmem [resolvable:$true] %s56
      %59 = dma.hbm_to_vmem [thread:$0]  %s55, 128, %s57, [#allocation8]
    $region17: #{model_forward.1} parent=1 // pred_fallthru
      _
    // Predicated region
    $region18: #{model_forward.1} parent=1 // pred_check
      _
    $region19: #{model_forward.1} parent=1 // pred_check_branch
      %61 = sbr.rel (0) target = $region21
    $region20: #{model_forward.1} parent=1 // pred_region
      %63 = dma.done [#allocation3], 128
    $region21: #{model_forward.1} parent=1 // pred_fallthru
      _
    // Predicated region
    $region22: #{model_forward.1} parent=1 // pred_check
      _
    $region23: #{model_forward.1} parent=1 // pred_check_branch
      %65 = sbr.rel (0) target = $region25
    $region24: #{model_forward.1} parent=1 // pred_region
      %67 = dma.done [#allocation5], 2048
    $region25: #{model_forward.1} parent=1 // pred_fallthru
      _
    // Predicated region
    $region26: #{model_forward.1} parent=1 // pred_check
      _
    $region27: #{model_forward.1} parent=1 // pred_check_branch
      %69 = sbr.rel (0) target = $region29
    $region28: #{model_forward.1} parent=1 // pred_region
      %71 = dma.done [#allocation5], 1024
    $region29: #{model_forward.1} parent=1 // pred_fallthru
      _
    // Predicated region
    $region30: #{model_forward.1} parent=1 // pred_check
      _
    $region31: #{model_forward.1} parent=1 // pred_check_branch
      %73 = sbr.rel (0) target = $region33
    $region32: #{model_forward.1} parent=1 // pred_region
      %75 = dma.done [#allocation8], 128
    $region33: #{model_forward.1} parent=1 // pred_fallthru
      _
    %v76 = vld [vmem:[#allocation7] sm:$0x7f]
    %v77 = vld [vmem:[#allocation2] sm:$0xff]
    %v78 = vld [vmem:[#allocation4] sm:$0xf]
    %v79 = vld [vmem:[#allocation4 + $0x4] sm:$0xf]
    %v80 = vld [vmem:[#allocation4 + $0x8] sm:$0xf]
    %v81 = vld [vmem:[#allocation4 + $0xc] sm:$0xf]
    %v82 = vld [vmem:[#allocation4 + $0x10] sm:$0xf]
    %v83 = vld [vmem:[#allocation4 + $0x14] sm:$0xf]
    %v84 = vld [vmem:[#allocation4 + $0x18] sm:$0xf]
    %v85 = vld [vmem:[#allocation4 + $0x1c] sm:$0xf]
    %v86 = vld [vmem:[#allocation4 + $0x20] sm:$0xf]
    %v87 = vld [vmem:[#allocation4 + $0x24] sm:$0xf]
    %v88 = vld [vmem:[#allocation4 + $0x28] sm:$0xf]
    %v89 = vld [vmem:[#allocation4 + $0x2c] sm:$0xf]
    %v90 = vld [vmem:[#allocation4 + $0x30] sm:$0xf]
    %v91 = vld [vmem:[#allocation4 + $0x34] sm:$0xf]
    %v92 = vld [vmem:[#allocation4 + $0x38] sm:$0xf]
    %v93 = vld [vmem:[#allocation4 + $0x3c] sm:$0xf]
    %v94 = vpack.c.bf16 %v77, %v77
    %v95 = vperm.slane %v76, 0
    %v112 = vunpack.c.l.b16 %v78
    %v113 = vunpack.c.l.b16 %v79
    %v114 = vunpack.c.l.b16 %v80
    %v115 = vunpack.c.l.b16 %v81
    %v116 = vunpack.c.l.b16 %v82
    %v117 = vunpack.c.l.b16 %v83
    %v118 = vunpack.c.l.b16 %v84
    %v119 = vunpack.c.l.b16 %v85
    %v120 = vunpack.c.l.b16 %v86
    %v121 = vunpack.c.l.b16 %v87
    %v122 = vunpack.c.l.b16 %v88
    %v123 = vunpack.c.l.b16 %v89
    %v124 = vunpack.c.l.b16 %v90
    %v125 = vunpack.c.l.b16 %v91
    %v126 = vunpack.c.l.b16 %v92
    %v127 = vunpack.c.l.b16 %v93
    %v128 = vpack.c.b16 %v113, %v112
    %v129 = vpack.c.b16 %v115, %v114
    %v130 = vpack.c.b16 %v117, %v116
    %v131 = vpack.c.b16 %v119, %v118
    %v132 = vpack.c.b16 %v121, %v120
    %v133 = vpack.c.b16 %v123, %v122
    %v134 = vpack.c.b16 %v125, %v124
    %v135 = vpack.c.b16 %v127, %v126
    %144 = vmatpush.bf16.msra.mxu0 %v135
    %145 = vmatpush.bf16.msra.mxu0 %v134
    %146 = vmatpush.bf16.msra.mxu0 %v133
    %147 = vmatpush.bf16.msra.mxu0 %v132
    %148 = vmatpush.bf16.msra.mxu0 %v131
    %149 = vmatpush.bf16.msra.mxu0 %v130
    %150 = vmatpush.bf16.msra.mxu0 %v129
    %151 = vmatpush.bf16.msra.mxu0 %v128
    %152 = vmatmul.bf16.gmra.mxu0 %v94
    %v153 = vpop.f32.mrf.mxu0
    %v154 = vadd.f32 %v95, %v153
    %v155 = vpop.f32.mrf.mxu0
    %156 = vdwg.mxu0
    %v157 = vrot.slane %v154, 4
    %v158 = vadd.f32 %v154, %v157
    %v159 = vrot.slane %v158, 2
    %v160 = vadd.f32 %v158, %v159
    %v161 = vrot.slane %v160, 1
    %v162 = vadd.f32 %v160, %v161
    %v163 = vrcp.pop 8.0
    %v164 = vmul.f32 8.0, %v163
    %v165 = vsub.f32 1.0, %v164
    %v166 = vmul.f32 %v163, %v165
    %v167 = vadd.f32 %v163, %v166
    %vm168 = vweird.f32 %v163
    %v169 = vsel %vm168, %v163, %v167
    %v170 = vmul.f32 %v162, %v169
    %v171 = vsub.f32 %v154, %v170
    %v172 = vmul.f32 %v171, %v171
    %v173 = vrot.slane %v172, 4
    %v174 = vadd.f32 %v172, %v173
    %v175 = vrot.slane %v174, 2
    %v176 = vadd.f32 %v174, %v175
    %v177 = vrot.slane %v176, 1
    %v178 = vadd.f32 %v176, %v177
    %v179 = vmul.f32 %v178, %v169
    %v180 = vadd.f32 %v179, 1e-05
    %v181 = vrsqrt.pop %v180
    %v182 = vmul.f32 %v181, %v180
    %v183 = vmul.f32 %v182, %v181
    %v184 = vmul.f32 0.5, %v183
    %v185 = vsub.f32 1.5, %v184
    %v186 = vmul.f32 %v181, %v185
    %vm187 = vweird.f32 %v180
    %vm188 = vweird.f32 %v181
    %vm189 = vmor %vm187, %vm188
    %v190 = vsel %vm189, %v181, %v186
    %v191 = vmul.f32 %v171, %v190
    %v192 = vperm.slane %v76, 1
    %v193 = vmul.f32 %v191, %v192
    %v194 = vperm.slane %v76, 2
    %v195 = vadd.f32 %v193, %v194
    %v196 = vmax.f32 %v195, 0.0
    %s197 = scalar_lea.vmem [#allocation4], 64
    %v198 = vld [vmem:[%s197] sm:$0xf]
    %v199 = vld [vmem:[%s197 + $0x4] sm:$0xf]
    %v200 = vld [vmem:[%s197 + $0x8] sm:$0xf]
    %v201 = vld [vmem:[%s197 + $0xc] sm:$0xf]
    %v202 = vld [vmem:[%s197 + $0x10] sm:$0xf]
    %v203 = vld [vmem:[%s197 + $0x14] sm:$0xf]
    %v204 = vld [vmem:[%s197 + $0x18] sm:$0xf]
    %v205 = vld [vmem:[%s197 + $0x1c] sm:$0xf]
    %v206 = vld [vmem:[%s197 + $0x20] sm:$0xf]
    %v207 = vld [vmem:[%s197 + $0x24] sm:$0xf]
    %v208 = vld [vmem:[%s197 + $0x28] sm:$0xf]
    %v209 = vld [vmem:[%s197 + $0x2c] sm:$0xf]
    %v210 = vld [vmem:[%s197 + $0x30] sm:$0xf]
    %v211 = vld [vmem:[%s197 + $0x34] sm:$0xf]
    %v212 = vld [vmem:[%s197 + $0x38] sm:$0xf]
    %v213 = vld [vmem:[%s197 + $0x3c] sm:$0xf]
    %v214 = vpack.c.bf16 %v196, %v196
    %v215 = vperm.slane %v76, 3
    %v232 = vunpack.c.l.b16 %v198
    %v233 = vunpack.c.l.b16 %v199
    %v234 = vunpack.c.l.b16 %v200
    %v235 = vunpack.c.l.b16 %v201
    %v236 = vunpack.c.l.b16 %v202
    %v237 = vunpack.c.l.b16 %v203
    %v238 = vunpack.c.l.b16 %v204
    %v239 = vunpack.c.l.b16 %v205
    %v240 = vunpack.c.l.b16 %v206
    %v241 = vunpack.c.l.b16 %v207
    %v242 = vunpack.c.l.b16 %v208
    %v243 = vunpack.c.l.b16 %v209
    %v244 = vunpack.c.l.b16 %v210
    %v245 = vunpack.c.l.b16 %v211
    %v246 = vunpack.c.l.b16 %v212
    %v247 = vunpack.c.l.b16 %v213
    %v248 = vpack.c.b16 %v233, %v232
    %v249 = vpack.c.b16 %v235, %v234
    %v250 = vpack.c.b16 %v237, %v236
    %v251 = vpack.c.b16 %v239, %v238
    %v252 = vpack.c.b16 %v241, %v240
    %v253 = vpack.c.b16 %v243, %v242
    %v254 = vpack.c.b16 %v245, %v244
    %v255 = vpack.c.b16 %v247, %v246
    %264 = vmatpush.bf16.msra.mxu0 %v255
    %265 = vmatpush.bf16.msra.mxu0 %v254
    %266 = vmatpush.bf16.msra.mxu0 %v253
    %267 = vmatpush.bf16.msra.mxu0 %v252
    %268 = vmatpush.bf16.msra.mxu0 %v251
    %269 = vmatpush.bf16.msra.mxu0 %v250
    %270 = vmatpush.bf16.msra.mxu0 %v249
    %271 = vmatpush.bf16.msra.mxu0 %v248
    %272 = vmatmul.bf16.gmra.mxu0 %v214
    %v273 = vpop.f32.mrf.mxu0
    %v274 = vadd.f32 %v215, %v273
    %v275 = vpop.f32.mrf.mxu0
    %276 = vdwg.mxu0
    %v277 = vrot.slane %v274, 4
    %v278 = vadd.f32 %v274, %v277
    %v279 = vrot.slane %v278, 2
    %v280 = vadd.f32 %v278, %v279
    %v281 = vrot.slane %v280, 1
    %v282 = vadd.f32 %v280, %v281
    %v283 = vmul.f32 %v282, %v169
    %v284 = vsub.f32 %v274, %v283
    %v285 = vmul.f32 %v284, %v284
    %v286 = vrot.slane %v285, 4
    %v287 = vadd.f32 %v285, %v286
    %v288 = vrot.slane %v287, 2
    %v289 = vadd.f32 %v287, %v288
    %v290 = vrot.slane %v289, 1
    %v291 = vadd.f32 %v289, %v290
    %v292 = vmul.f32 %v291, %v169
    %v293 = vadd.f32 %v292, 1e-05
    %v294 = vrsqrt.pop %v293
    %v295 = vmul.f32 %v294, %v293
    %v296 = vmul.f32 %v295, %v294
    %v297 = vmul.f32 0.5, %v296
    %v298 = vsub.f32 1.5, %v297
    %v299 = vmul.f32 %v294, %v298
    %vm300 = vweird.f32 %v293
    %vm301 = vweird.f32 %v294
    %vm302 = vmor %vm300, %vm301
    %v303 = vsel %vm302, %v294, %v299
    %v304 = vmul.f32 %v284, %v303
    %v305 = vperm.slane %v76, 4
    %v306 = vmul.f32 %v304, %v305
    %v307 = vperm.slane %v76, 5
    %v308 = vadd.f32 %v306, %v307
    %v309 = vmax.f32 %v308, 0.0
    %v310 = vld [vmem:[#allocation6] sm:$0xf]
    %v311 = vld [vmem:[#allocation6 + $0x4] sm:$0xf]
    %v312 = vld [vmem:[#allocation6 + $0x8] sm:$0xf]
    %v313 = vld [vmem:[#allocation6 + $0xc] sm:$0xf]
    %v314 = vld [vmem:[#allocation6 + $0x10] sm:$0xf]
    %v315 = vld [vmem:[#allocation6 + $0x14] sm:$0xf]
    %v316 = vld [vmem:[#allocation6 + $0x18] sm:$0xf]
    %v317 = vld [vmem:[#allocation6 + $0x1c] sm:$0xf]
    %v318 = vld [vmem:[#allocation6 + $0x20] sm:$0xf]
    %v319 = vld [vmem:[#allocation6 + $0x24] sm:$0xf]
    %v320 = vld [vmem:[#allocation6 + $0x28] sm:$0xf]
    %v321 = vld [vmem:[#allocation6 + $0x2c] sm:$0xf]
    %v322 = vld [vmem:[#allocation6 + $0x30] sm:$0xf]
    %v323 = vld [vmem:[#allocation6 + $0x34] sm:$0xf]
    %v324 = vld [vmem:[#allocation6 + $0x38] sm:$0xf]
    %v325 = vld [vmem:[#allocation6 + $0x3c] sm:$0xf]
    %v326 = vpack.c.bf16 %v309, %v309
    %v327 = vperm.slane %v76, 6
    %v344 = vunpack.c.l.b16 %v310
    %v345 = vunpack.c.l.b16 %v311
    %v346 = vunpack.c.l.b16 %v312
    %v347 = vunpack.c.l.b16 %v313
    %v348 = vunpack.c.l.b16 %v314
    %v349 = vunpack.c.l.b16 %v315
    %v350 = vunpack.c.l.b16 %v316
    %v351 = vunpack.c.l.b16 %v317
    %v352 = vunpack.c.l.b16 %v318
    %v353 = vunpack.c.l.b16 %v319
    %v354 = vunpack.c.l.b16 %v320
    %v355 = vunpack.c.l.b16 %v321
    %v356 = vunpack.c.l.b16 %v322
    %v357 = vunpack.c.l.b16 %v323
    %v358 = vunpack.c.l.b16 %v324
    %v359 = vunpack.c.l.b16 %v325
    %v360 = vpack.c.b16 %v345, %v344
    %v361 = vpack.c.b16 %v347, %v346
    %v362 = vpack.c.b16 %v349, %v348
    %v363 = vpack.c.b16 %v351, %v350
    %v364 = vpack.c.b16 %v353, %v352
    %v365 = vpack.c.b16 %v355, %v354
    %v366 = vpack.c.b16 %v357, %v356
    %v367 = vpack.c.b16 %v359, %v358
    %376 = vmatpush.bf16.msra.mxu0 %v367
    %377 = vmatpush.bf16.msra.mxu0 %v366
    %378 = vmatpush.bf16.msra.mxu0 %v365
    %379 = vmatpush.bf16.msra.mxu0 %v364
    %380 = vmatpush.bf16.msra.mxu0 %v363
    %381 = vmatpush.bf16.msra.mxu0 %v362
    %382 = vmatpush.bf16.msra.mxu0 %v361
    %383 = vmatpush.bf16.msra.mxu0 %v360
    %384 = vmatmul.bf16.gmra.mxu0 %v326
    %v385 = vpop.f32.mrf.mxu0
    %v386 = vadd.f32 %v327, %v385
    %v387 = vpop.f32.mrf.mxu0
    %388 = vdwg.mxu0
    %v389 = vlaneseq
    %v390 = vand.u32 %v389, 127
    %vm391 = vcmp.ge.s32.totalorder %v390, 0
    %vm392 = vcmp.lt.s32.totalorder %v390, 64
    %vm393 = vmand %vm391, %vm392
    %v394 = vsel %vm393, %v386, -1e+30
    %395 = vmax.xlane.f32.xlu0 %v394
    %v396 = vpop.xlane.xlu0 %395
    %v397 = vsel %vm393, %v396, 0.0
    %vm398 = vcmp.ge.s32.totalorder %v390, 64
    %vm399 = vcmp.lt.s32.totalorder %v390, 96
    %vm400 = vmand %vm398, %vm399
    %v401 = vsel %vm400, %v386, -1e+30
    %402 = vmax.xlane.f32.xlu0 %v401
    %v403 = vpop.xlane.xlu0 %402
    %v404 = vsel %vm400, %v403, %v397
    %v405 = vsub.f32 %v386, %v404
    %v406 = vmul.f32 %v405, 1.442695
    %v407 = vpow.pop %v406
    %v408 = vsel %vm393, %v407, 0.0
    %409 = vadd.xlane.f32.xlu0 %v408
    %v410 = vpop.xlane.xlu0 %409
    %v411 = vrcp.pop %v410
    %v412 = vmul.f32 %v410, %v411
    %v413 = vsub.f32 1.0, %v412
    %v414 = vmul.f32 %v411, %v413
    %v415 = vadd.f32 %v411, %v414
    %vm416 = vweird.f32 %v410
    %vm417 = vweird.f32 %v411
    %vm418 = vmor %vm416, %vm417
    %v419 = vsel %vm418, %v411, %v415
    %v420 = vand.u32 2147483647, %v410
    %vm421 = vcmp.eq.f32.partialorder %v420, 8.507059e+37
    %v422 = vand.u32 %v410, 2147483648
    %v423 = vor.u32 1.1754944e-38, %v422
    %v424 = vsel %vm421, %v423, %v419
    %v425 = vmul.f32 1.0, %v424
    %v426 = vsel %vm393, %v425, 0.0
    %v427 = vsel %vm400, %v407, 0.0
    %428 = vadd.xlane.f32.xlu0 %v427
    %v429 = vpop.xlane.xlu0 %428
    %v430 = vrcp.pop %v429
    %v431 = vmul.f32 %v429, %v430
    %v432 = vsub.f32 1.0, %v431
    %v433 = vmul.f32 %v430, %v432
    %v434 = vadd.f32 %v430, %v433
    %vm435 = vweird.f32 %v429
    %vm436 = vweird.f32 %v430
    %vm437 = vmor %vm435, %vm436
    %v438 = vsel %vm437, %v430, %v434
    %v439 = vand.u32 2147483647, %v429
    %vm440 = vcmp.eq.f32.partialorder %v439, 8.507059e+37
    %v441 = vand.u32 %v429, 2147483648
    %v442 = vor.u32 1.1754944e-38, %v441
    %v443 = vsel %vm440, %v442, %v438
    %v444 = vmul.f32 1.0, %v443
    %v445 = vsel %vm400, %v444, %v426
    %v446 = vmul.f32 %v407, %v445
    %447 = vst [vmem:[%s4] sm:$0xff] %v446
    // Predicated region
    $region34: #{model_forward.1} parent=1 // pred_check
      _
    $region35: #{model_forward.1} parent=1 // pred_check_branch
      %449 = sbr.rel (0) target = $region37
    $region36: #{model_forward.1} parent=1 // pred_region
      _
    $region37: #{model_forward.1} parent=1 // pred_fallthru
      _
    // Predicated region
    $region38: #{model_forward.1} parent=1 // pred_check
      _
    $region39: #{model_forward.1} parent=1 // pred_check_branch
      %451 = sbr.rel (0) target = $region41
    $region40: #{model_forward.1} parent=1 // pred_region
      _
    $region41: #{model_forward.1} parent=1 // pred_fallthru
      _
    %452 = vsyncpa [#allocation3], 1
    %453 = vsyncpa [#allocation5], 1
    %454 = vsyncpa [#allocation8], 1

</llo_original>
